<compile_context>
chip_gen: v7x
topology: tpu7x:2x2x1
jax: 0.10.0
libtpu: 0.0.40
codegen_flags: <defaults>
</compile_context>

<pallas_src>
import math

import jax
import jax.numpy as jnp
from jax.experimental import pallas as pl
from jax.experimental.pallas import tpu as pltpu


def mlp_model_kernel(x_ref, tb_ref, we_ref, w1_ref, w2_ref, w3_ref, b_ref, out_ref):
    # One grid step = one batch element x one tile of lane-packed rows.
    #   x_ref  : (1, BG, P*Cin) bf16  packed seq rows (P logical rows per vector row)
    #   tb_ref : (1, 1,  P*H)   f32   per-batch folded bias = tile_P(time_embed + embedder.bias)
    #   we/w1/w2/w3_ref         bf16  block-diagonal weights, VMEM-resident across grid
    #   b_ref  : (3, P*H)       f32   [tile_P(b1) ; tile_P(b2) ; tile_P(b3) zero-padded]
    #   out_ref: (1, BG, P*A)   f32
    cdt = we_ref.dtype                      # bf16 compute dtype for MXU operands
    pa = w3_ref.shape[1]                    # P*A lanes of the final layer

    x = x_ref[0]                            # (BG, P*Cin) bf16
    tb = tb_ref[0]                          # (1, P*H)    f32

    # embedder(seq) + time_embed  (embedder bias already folded into tb)
    h = jnp.dot(x, we_ref[...], preferred_element_type=jnp.float32) + tb          # (BG, P*H)

    # mlp: Linear -> ReLU -> Linear -> ReLU -> Linear   (f32 accumulation)
    h = jnp.maximum(
        jnp.dot(h.astype(cdt), w1_ref[...],
                preferred_element_type=jnp.float32) + b_ref[0:1, :], 0.0)
    h = jnp.maximum(
        jnp.dot(h.astype(cdt), w2_ref[...],
                preferred_element_type=jnp.float32) + b_ref[1:2, :], 0.0)
    y = jnp.dot(h.astype(cdt), w3_ref[...],
                preferred_element_type=jnp.float32) + b_ref[2:3, :pa]              # (BG, P*A)

    out_ref[0] = y.astype(out_ref.dtype)


def _block_diag(w, p):
    """(r, c) -> (p*r, p*c) with `w` repeated along the diagonal."""
    if p == 1:
        return w
    return jnp.kron(jnp.eye(p, dtype=w.dtype), w)


def _tile_lanes(b, p):
    """(1, n) -> (1, p*n) by repeating along lanes (one copy per packed logical row)."""
    return jnp.tile(b, (1, p)) if p > 1 else b


def _choose_block_g(g, max_block=1024):
    """Packed-row tile: whole axis if it fits one large block, else a big block with
    modest padding (never degenerate to tiny per-step tiles)."""
    if g <= max_block:
        return g, g                                   # full dim: always layout-legal
    block = max_block
    while block > 128 and (-(-g // block) * block - g) > max(g // 8, block // 4):
        block //= 2
    gp = -(-g // block) * block
    return block, gp


def mlp_model_forward(seq, t, params):
    B, L, Cin = seq.shape
    H = params["w1"].shape[0]
    A = params["w3"].shape[1]

    # Lane-packing factor: pack P logical rows per vector row so the HxH layers run
    # P*H = 128 lanes wide (full vreg / v5e MXU width; clean halves of v6e/v7x 256 MXU).
    P = 128 // H if (H <= 128 and 128 % H == 0) else 1

    # ---- tiny glue done in plain JAX (hoisted out of the kernel) ----
    # GaussianFourierProjection -> Linear == time_embedder(t); fold embedder.bias in too.
    x_proj = t[:, None] * params["fourier_W"][None, :] * (2.0 * math.pi)       # (B, H/2)
    four = jnp.concatenate([jnp.sin(x_proj), jnp.cos(x_proj)], axis=-1)        # (B, H)
    temb = four @ params["wt"] + params["bt"]                                  # (B, H)
    row_bias = _tile_lanes((temb + params["be"]).astype(jnp.float32), P)       # (B, P*H)
    row_bias = row_bias.reshape(B, 1, P * H)                                   # tiny input

    # ---- lane-pack seq: P consecutive rows of one batch -> one vector row ----
    Lp = -(-L // P) * P
    seq_p = seq if Lp == L else jnp.pad(seq, ((0, 0), (0, Lp - L), (0, 0)))
    G = Lp // P
    block_g, Gp = _choose_block_g(G)
    seq_packed = seq_p.reshape(B, G, P * Cin)
    if Gp != G:
        seq_packed = jnp.pad(seq_packed, ((0, 0), (0, Gp - G), (0, 0)))
    seq_packed = seq_packed.astype(jnp.bfloat16)        # halve dominant input DMA bytes

    # ---- block-diagonal bf16 weights (resident in VMEM across the whole grid) ----
    we = _block_diag(params["we"], P).astype(jnp.bfloat16)      # (P*Cin, P*H)
    w1 = _block_diag(params["w1"], P).astype(jnp.bfloat16)      # (P*H,  P*H)
    w2 = _block_diag(params["w2"], P).astype(jnp.bfloat16)      # (P*H,  P*H)
    w3 = _block_diag(params["w3"], P).astype(jnp.bfloat16)      # (P*H,  P*A)

    b1t = _tile_lanes(params["b1"], P)                                         # (1, P*H)
    b2t = _tile_lanes(params["b2"], P)                                         # (1, P*H)
    b3t = jnp.pad(_tile_lanes(params["b3"], P), ((0, 0), (0, P * (H - A))))    # (1, P*H)
    bstack = jnp.concatenate([b1t, b2t, b3t], axis=0).astype(jnp.float32)      # (3, P*H)

    def resident(shape):
        # Constant index map: fetched once, stays resident in VMEM across grid steps.
        return pl.BlockSpec(shape, lambda b, g: (0,) * len(shape))

    grid = (B, Gp // block_g)
    grid_spec = pltpu.PrefetchScalarGridSpec(
        num_scalar_prefetch=0,
        grid=grid,
        in_specs=[
            pl.BlockSpec((1, block_g, P * Cin), lambda b, g: (b, g, 0)),  # packed seq tile
            pl.BlockSpec((1, 1, P * H), lambda b, g: (b, 0, 0)),          # per-batch bias
            resident((P * Cin, P * H)),                                   # embedder weight
            resident((P * H, P * H)),                                     # mlp layer 1
            resident((P * H, P * H)),                                     # mlp layer 2
            resident((P * H, P * A)),                                     # mlp layer 3
            resident((3, P * H)),                                         # packed b1/b2/b3
        ],
        out_specs=pl.BlockSpec((1, block_g, P * A), lambda b, g: (b, g, 0)),
    )

    out_packed = pl.pallas_call(
        mlp_model_kernel,
        out_shape=jax.ShapeDtypeStruct((B, Gp, P * A), jnp.float32),
        grid_spec=grid_spec,
        compiler_params=pltpu.CompilerParams(
            dimension_semantics=("parallel", "parallel"),
        ),
    )(seq_packed, row_bias, we, w1, w2, w3, bstack)

    # Unpack lanes back to logical rows and strip the padded rows.
    return out_packed.reshape(B, Gp * P, A)[:, :L, :]


def mlp_model_reference(seq, t, params):
    """Pure-JAX f32 reference mirroring the PyTorch forward (classifier=False)."""
    x_proj = t[:, None] * params["fourier_W"][None, :] * 2.0 * math.pi
    four = jnp.concatenate([jnp.sin(x_proj), jnp.cos(x_proj)], axis=-1)
    temb = four @ params["wt"] + params["bt"]                  # (B, H)
    feat = seq @ params["we"] + params["be"]                   # (B, L, H)
    feat = feat + temb[:, None, :]
    feat = jnp.maximum(feat @ params["w1"] + params["b1"], 0.0)
    feat = jnp.maximum(feat @ params["w2"] + params["b2"], 0.0)
    return feat @ params["w3"] + params["b3"]                  # (B, L, A)


if __name__ == "__main__":
    # Small shapes consistent with the module: hidden_dim=32, alphabet_size=4.
    B, L, A, H = 2, 8, 4, 32
    Cin = 2 * A   # classifier=False -> embedder input is 2 * alphabet_size

    key = jax.random.PRNGKey(0)
    ks = jax.random.split(key, 13)

    def init_w(k, shape, fan_in):
        bound = 1.0 / math.sqrt(fan_in)
        return jax.random.uniform(k, shape, jnp.float32, -bound, bound)

    params = {
        "fourier_W": jax.random.normal(ks[0], (H // 2,), jnp.float32) * 30.0,
        "wt": init_w(ks[1], (H, H), H),     "bt": init_w(ks[2], (1, H), H),
        "we": init_w(ks[3], (Cin, H), Cin), "be": init_w(ks[4], (1, H), Cin),
        "w1": init_w(ks[5], (H, H), H),     "b1": init_w(ks[6], (1, H), H),
        "w2": init_w(ks[7], (H, H), H),     "b2": init_w(ks[8], (1, H), H),
        "w3": init_w(ks[9], (H, A), H),     "b3": init_w(ks[10], (1, A), H),
    }
    # TODO(synk): classifier head / cls_free_guidance class-embedding branches are not
    # exercised (classifier=False, cls_free_guidance=False), matching the plain forward.

    seq = jax.random.normal(ks[11], (B, L, Cin), jnp.float32)
    t = jax.random.uniform(ks[12], (B,), jnp.float32)

    out = mlp_model_forward(seq, t, params)
    out = jax.block_until_ready(out)
    assert out.shape == (B, L, A), out.shape

    ref = mlp_model_reference(seq, t, params)
    # bf16 matmul operands (f32 accumulation) -> relaxed tolerance vs the f32 reference.
    assert jnp.allclose(out, ref, atol=5e-2, rtol=5e-2), "mismatch vs reference"

    print("KERNEL_OK")
</pallas_src>

<mosaic_0001>
module attributes {stable_mosaic.version = 11 : i64} {
  func.func @mlp_model_kernel(%arg0: i32, %arg1: i32, %arg2: memref<1x2x32xbf16, #tpu.memory_space<vmem>>, %arg3: memref<1x1x128xf32, #tpu.memory_space<vmem>>, %arg4: memref<32x128xbf16, #tpu.memory_space<vmem>>, %arg5: memref<128x128xbf16, #tpu.memory_space<vmem>>, %arg6: memref<128x128xbf16, #tpu.memory_space<vmem>>, %arg7: memref<128x16xbf16, #tpu.memory_space<vmem>>, %arg8: memref<3x128xf32, #tpu.memory_space<vmem>>, %arg9: memref<1x2x16xf32, #tpu.memory_space<vmem>>) attributes {dimension_semantics = [#tpu.dimension_semantics<parallel>, #tpu.dimension_semantics<parallel>], iteration_bounds = array<i64: 2, 1>, scalar_prefetch = 0 : i64, scratch_operands = 0 : i64, tpu.core_type = #tpu.core_type<tc>, window_params = [{transform_indices = @transform_0, window_bounds = array<i64: 1, 2, 32>}, {transform_indices = @transform_1, window_bounds = array<i64: 1, 1, 128>}, {pipeline_mode = #tpu.pipeline_mode<synchronous>, transform_indices = @transform_2, window_bounds = array<i64: 32, 128>}, {pipeline_mode = #tpu.pipeline_mode<synchronous>, transform_indices = @transform_3, window_bounds = array<i64: 128, 128>}, {pipeline_mode = #tpu.pipeline_mode<synchronous>, transform_indices = @transform_4, window_bounds = array<i64: 128, 128>}, {pipeline_mode = #tpu.pipeline_mode<synchronous>, transform_indices = @transform_5, window_bounds = array<i64: 128, 16>}, {pipeline_mode = #tpu.pipeline_mode<synchronous>, transform_indices = @transform_6, window_bounds = array<i64: 3, 128>}, {transform_indices = @transform_7, window_bounds = array<i64: 1, 2, 16>}]} {
    %c0 = arith.constant 0 : index
    %c0_0 = arith.constant 0 : index
    %c0_1 = arith.constant 0 : index
    %0 = vector.load %arg2[%c0, %c0_0, %c0_1] : memref<1x2x32xbf16, #tpu.memory_space<vmem>>, vector<1x2x32xbf16>
    %1 = vector.shape_cast %0 : vector<1x2x32xbf16> to vector<2x32xbf16>
    %c0_2 = arith.constant 0 : index
    %c0_3 = arith.constant 0 : index
    %c0_4 = arith.constant 0 : index
    %2 = vector.load %arg3[%c0_2, %c0_3, %c0_4] : memref<1x1x128xf32, #tpu.memory_space<vmem>>, vector<1x1x128xf32>
    %3 = vector.shape_cast %2 : vector<1x1x128xf32> to vector<1x128xf32>
    %c0_5 = arith.constant 0 : index
    %c0_6 = arith.constant 0 : index
    %4 = vector.load %arg4[%c0_5, %c0_6] : memref<32x128xbf16, #tpu.memory_space<vmem>>, vector<32x128xbf16>
    %cst = arith.constant dense<0.000000e+00> : vector<2x128xf32>
    %5 = tpu.matmul %1, %4, %cst {dimension_numbers = #tpu.dot_dimension_numbers<[1], [0], [0], [1], [0, 0, 1, 1], [], []>} : vector<2x32xbf16>, vector<32x128xbf16>, vector<2x128xf32> -> vector<2x128xf32>
    %6 = vector.broadcast %3 : vector<1x128xf32> to vector<2x128xf32>
    %7 = arith.addf %5, %6 : vector<2x128xf32>
    %8 = arith.truncf %7 : vector<2x128xf32> to vector<2x128xbf16>
    %c0_7 = arith.constant 0 : index
    %c0_8 = arith.constant 0 : index
    %9 = vector.load %arg5[%c0_7, %c0_8] : memref<128x128xbf16, #tpu.memory_space<vmem>>, vector<128x128xbf16>
    %cst_9 = arith.constant dense<0.000000e+00> : vector<2x128xf32>
    %10 = tpu.matmul %8, %9, %cst_9 {dimension_numbers = #tpu.dot_dimension_numbers<[1], [0], [0], [1], [0, 0, 1, 1], [], []>} : vector<2x128xbf16>, vector<128x128xbf16>, vector<2x128xf32> -> vector<2x128xf32>
    %c0_10 = arith.constant 0 : index
    %c0_11 = arith.constant 0 : index
    %11 = vector.load %arg8[%c0_10, %c0_11] : memref<3x128xf32, #tpu.memory_space<vmem>>, vector<1x128xf32>
    %12 = vector.broadcast %11 : vector<1x128xf32> to vector<2x128xf32>
    %13 = arith.addf %10, %12 : vector<2x128xf32>
    %cst_12 = arith.constant 0.000000e+00 : f32
    %14 = vector.broadcast %cst_12 : f32 to vector<2x128xf32>
    %15 = arith.maximumf %13, %14 : vector<2x128xf32>
    %16 = arith.truncf %15 : vector<2x128xf32> to vector<2x128xbf16>
    %c0_13 = arith.constant 0 : index
    %c0_14 = arith.constant 0 : index
    %17 = vector.load %arg6[%c0_13, %c0_14] : memref<128x128xbf16, #tpu.memory_space<vmem>>, vector<128x128xbf16>
    %cst_15 = arith.constant dense<0.000000e+00> : vector<2x128xf32>
    %18 = tpu.matmul %16, %17, %cst_15 {dimension_numbers = #tpu.dot_dimension_numbers<[1], [0], [0], [1], [0, 0, 1, 1], [], []>} : vector<2x128xbf16>, vector<128x128xbf16>, vector<2x128xf32> -> vector<2x128xf32>
    %c1 = arith.constant 1 : index
    %c0_16 = arith.constant 0 : index
    %19 = vector.load %arg8[%c1, %c0_16] : memref<3x128xf32, #tpu.memory_space<vmem>>, vector<1x128xf32>
    %20 = vector.broadcast %19 : vector<1x128xf32> to vector<2x128xf32>
    %21 = arith.addf %18, %20 : vector<2x128xf32>
    %cst_17 = arith.constant 0.000000e+00 : f32
    %22 = vector.broadcast %cst_17 : f32 to vector<2x128xf32>
    %23 = arith.maximumf %21, %22 : vector<2x128xf32>
    %24 = arith.truncf %23 : vector<2x128xf32> to vector<2x128xbf16>
    %c0_18 = arith.constant 0 : index
    %c0_19 = arith.constant 0 : index
    %25 = vector.load %arg7[%c0_18, %c0_19] : memref<128x16xbf16, #tpu.memory_space<vmem>>, vector<128x16xbf16>
    %cst_20 = arith.constant dense<0.000000e+00> : vector<2x16xf32>
    %26 = tpu.matmul %24, %25, %cst_20 {dimension_numbers = #tpu.dot_dimension_numbers<[1], [0], [0], [1], [0, 0, 1, 1], [], []>} : vector<2x128xbf16>, vector<128x16xbf16>, vector<2x16xf32> -> vector<2x16xf32>
    %c2 = arith.constant 2 : index
    %c0_21 = arith.constant 0 : index
    %27 = vector.load %arg8[%c2, %c0_21] : memref<3x128xf32, #tpu.memory_space<vmem>>, vector<1x16xf32>
    %28 = vector.broadcast %27 : vector<1x16xf32> to vector<2x16xf32>
    %29 = arith.addf %26, %28 : vector<2x16xf32>
    %c0_22 = arith.constant 0 : index
    %c0_23 = arith.constant 0 : index
    %c0_24 = arith.constant 0 : index
    %30 = vector.load %arg9[%c0_22, %c0_23, %c0_24] : memref<1x2x16xf32, #tpu.memory_space<vmem>>, vector<1x2x16xf32>
    %31 = vector.shape_cast %30 : vector<1x2x16xf32> to vector<2x16xf32>
    %32 = vector.shape_cast %29 : vector<2x16xf32> to vector<1x2x16xf32>
    tpu.vector_store %arg9[%c0_22, %c0_23, %c0_24], %32 {strides = array<i32>} : memref<1x2x16xf32, #tpu.memory_space<vmem>>, vector<1x2x16xf32>,
    return
  }
  func.func @transform_0(%arg0: i32, %arg1: i32) -> (i32, i32, i32) {
    %c0_i32 = arith.constant 0 : i32
    %c0_i32_0 = arith.constant 0 : i32
    return %arg0, %arg1, %c0_i32 : i32, i32, i32
  }
  func.func @transform_1(%arg0: i32, %arg1: i32) -> (i32, i32, i32) {
    %c0_i32 = arith.constant 0 : i32
    %c0_i32_0 = arith.constant 0 : i32
    %c0_i32_1 = arith.constant 0 : i32
    return %arg0, %c0_i32, %c0_i32_0 : i32, i32, i32
  }
  func.func @transform_2(%arg0: i32, %arg1: i32) -> (i32, i32) {
    %c0_i32 = arith.constant 0 : i32
    %c0_i32_0 = arith.constant 0 : i32
    %c0_i32_1 = arith.constant 0 : i32
    return %c0_i32, %c0_i32_0 : i32, i32
  }
  func.func @transform_3(%arg0: i32, %arg1: i32) -> (i32, i32) {
    %c0_i32 = arith.constant 0 : i32
    %c0_i32_0 = arith.constant 0 : i32
    %c0_i32_1 = arith.constant 0 : i32
    return %c0_i32, %c0_i32_0 : i32, i32
  }
  func.func @transform_4(%arg0: i32, %arg1: i32) -> (i32, i32) {
    %c0_i32 = arith.constant 0 : i32
    %c0_i32_0 = arith.constant 0 : i32
    %c0_i32_1 = arith.constant 0 : i32
    return %c0_i32, %c0_i32_0 : i32, i32
  }
  func.func @transform_5(%arg0: i32, %arg1: i32) -> (i32, i32) {
    %c0_i32 = arith.constant 0 : i32
    %c0_i32_0 = arith.constant 0 : i32
    %c0_i32_1 = arith.constant 0 : i32
    return %c0_i32, %c0_i32_0 : i32, i32
  }
  func.func @transform_6(%arg0: i32, %arg1: i32) -> (i32, i32) {
    %c0_i32 = arith.constant 0 : i32
    %c0_i32_0 = arith.constant 0 : i32
    %c0_i32_1 = arith.constant 0 : i32
    return %c0_i32, %c0_i32_0 : i32, i32
  }
  func.func @transform_7(%arg0: i32, %arg1: i32) -> (i32, i32, i32) {
    %c0_i32 = arith.constant 0 : i32
    %c0_i32_0 = arith.constant 0 : i32
    return %arg0, %arg1, %c0_i32 : i32, i32, i32
  }
}

</mosaic_0001>

<llo_original>
// kernel: tpu_custom_call.1
$region0: #{tpu_custom_call.1}
  #allocation0 [shape = 'u32[]', space=smem, size = 0x4, offset = 0x4, fixed_abs, tag = 'smem constant byte address 0x4 - core index']
  #allocation1 [shape = 'u32[144,128]{1,0:T(1,128)}', space=vmem, size = 0x12000, scoped, tag = 'internal scratch']
  %s0 = inlined_call_operand.vmem [shape: bf16[2,2,32], index: 0, kind: input, shape index: {}]
  %s1 = inlined_call_operand.hbm [shape: f32[2,1,128], index: 1, kind: input, shape index: {}]
  %s2 = inlined_call_operand.vmem [shape: bf16[32,128], index: 2, kind: input, shape index: {}]
  %s3 = inlined_call_operand.vmem [shape: bf16[128,128], index: 3, kind: input, shape index: {}]
  %s4 = inlined_call_operand.hbm [shape: bf16[128,128], index: 4, kind: input, shape index: {}]
  %s5 = inlined_call_operand.vmem [shape: bf16[128,16], index: 5, kind: input, shape index: {}]
  %s6 = inlined_call_operand.vmem [shape: f32[3,128], index: 6, kind: input, shape index: {}]
  %s7 = inlined_call_operand.hbm [shape: f32[2,2,16], index: 7, kind: output, shape index: {}]
  %s8 = sld [smem:[#allocation0]]
  $region69: #{tpu_custom_call.1} parent=0
    _
  %s10 = ssub.s32 1, %s8
  %s11 = scalar_select 0, %s10, %s8
  $region1: #{tpu_custom_call.1} parent=0
    #allocation2 [shape = 'u8[1024]{0}', space=vmem, size = 0x400, scoped, tag = 'input window, operand 1']
    #allocation3 [shape = 's32[2]{0}', space=sflag, size = 0x8, scoped, tag = 'scoped memory for tpu_custom_call.1']
    #allocation4 [shape = 's32[2]{0}', space=sflag, size = 0x8, scoped, tag = 'scoped memory for tpu_custom_call.1']
    #allocation5 [shape = 'u8[32768]{0}', space=vmem, size = 0x8000, scoped, tag = 'input window, operand 4, single buffered']
    #allocation6 [shape = 's32[1]{0}', space=sflag, size = 0x4, scoped, tag = 'scoped memory for tpu_custom_call.1']
    #allocation7 [shape = 'u8[2048]{0}', space=vmem, size = 0x800, scoped, tag = 'output window, operand 0']
    %12 = vsyncpa [#allocation3], 0
    %s13 = scalar_lea.sflag [#allocation3], 1
    %14 = vsyncpa %s13, 0
    %15 = vsyncpa [#allocation6], 0
    %16 = vsyncpa [#allocation4], 0
    %s17 = scalar_lea.sflag [#allocation4], 1
    %18 = vsyncpa %s17, 0
    loop: start=0, step=1, limit=4
    $region2: #{tpu_custom_call.1} parent=1 // loop_pre_header
      _
    $region3: #{tpu_custom_call.1} parent=1 // loop_header
      %s20 = sphi 0, %s24
      %p21 = scmp.ge.s32.totalorder %s20, 4
      %s27 = sphi 0, %s39
      %s28 = sphi 0, %s35
      %s29 = sphi 0, %s27
      %s30 = sphi 0, %s28
      %s31 = sphi 0, %s29
      %s32 = sphi 0, %s30
      %s44 = sphi 0, %s46
      %s47 = sphi 0, %s44
      %s48 = sphi 0, %s47
      %s64 = sphi 0, %s48
      %s70 = sphi 0, %s72
      %s73 = sphi 0, %s70
      %s74 = sphi 0, %s73
      %s90 = sphi 0, %s74
      %s94 = sphi 0, %s94
      %s96 = sphi 0, %s94
      %s97 = sphi 0, %s96
      %s111 = sphi 0, %s97
      %s115 = sphi 0, %s115
      %s117 = sphi 0, %s115
      %s118 = sphi 0, %s117
      %s132 = sphi 0, %s118
      %s136 = sphi 0, %s136
      %s138 = sphi 0, %s136
      %s139 = sphi 0, %s138
      %s153 = sphi 0, %s139
      %s157 = sphi 0, %s157
      %s159 = sphi 0, %s157
      %s160 = sphi 0, %s159
      %s174 = sphi 0, %s160
      %s178 = sphi 0, %s178
      %s180 = sphi 0, %s178
      %s181 = sphi 0, %s180
      %s195 = sphi 0, %s181
      %s203 = sphi 0, %s205
      %s206 = sphi 0, %s203
      %s207 = sphi 0, %s206
      %s223 = sphi 0, %s207
    $region4: #{tpu_custom_call.1} parent=1 // loop_header_branch
      %23 = sbr.rel (%p21) target = $region8
    $region5: #{tpu_custom_call.1} parent=1 // loop_body
      %s25 = ssub.s32 %s20, 1
      %s26 = ssub.s32 %s20, 2
      %s33 = sadd.s32 1, %s28
      %p34 = scmp.ge.s32.totalorder %s33, 1
      %s35 = scalar_select %p34, 0, %s33
      %s36 = sadd.s32 1, %s27
      %s37 = scalar_select %p34, %s36, %s27
      %p38 = scmp.ge.s32.totalorder %s37, 2
      %s39 = scalar_select %p38, 0, %s37
      %s40 = ssub.s32 %s27, %s39
      %s41 = ssub.s32 %s28, %s35
      %s42 = sor.u32 %s40, %s41
      %p43 = scmp.eq.s32.totalorder %s42, 0
      %s45 = sadd.s32 %s44, 1
      %s46 = scalar_select %p43, %s44, %s45
      %p49 = pneg %p43
      %p50 = scmp.eq.s32.totalorder %s20, 1
      %p51 = por %p49, %p50
      %p52 = scmp.ne.s32.totalorder %s44, %s47
      %p53 = scmp.eq.s32.totalorder %s20, 0
      %p54 = por %p52, %p53
      %p55 = scmp.ne.s32.totalorder %s44, %s47
      %p56 = scmp.eq.s32.totalorder %s25, 1
      %p57 = por %p55, %p56
      %p58 = scmp.ne.s32.totalorder %s47, %s48
      %p59 = scmp.eq.s32.totalorder %s25, 0
      %p60 = por %p58, %p59
      %p61 = scmp.ne.s32.totalorder %s47, %s48
      %p62 = scmp.eq.s32.totalorder %s26, 1
      %p63 = por %p61, %p62
      %p65 = scmp.ne.s32.totalorder %s48, %s64
      %p66 = scmp.eq.s32.totalorder %s26, 0
      %p67 = por %p65, %p66
      %s68 = ssub.s32 %s27, %s39
      %p69 = scmp.eq.s32.totalorder %s68, 0
      %s71 = sadd.s32 %s70, 1
      %s72 = scalar_select %p69, %s70, %s71
      %p75 = pneg %p69
      %p76 = scmp.eq.s32.totalorder %s20, 1
      %p77 = por %p75, %p76
      %p78 = scmp.ne.s32.totalorder %s70, %s73
      %p79 = scmp.eq.s32.totalorder %s20, 0
      %p80 = por %p78, %p79
      %p81 = scmp.ne.s32.totalorder %s70, %s73
      %p82 = scmp.eq.s32.totalorder %s25, 1
      %p83 = por %p81, %p82
      %p84 = scmp.ne.s32.totalorder %s73, %s74
      %p85 = scmp.eq.s32.totalorder %s25, 0
      %p86 = por %p84, %p85
      %p87 = scmp.ne.s32.totalorder %s73, %s74
      %p88 = scmp.eq.s32.totalorder %s26, 1
      %p89 = por %p87, %p88
      %p91 = scmp.ne.s32.totalorder %s74, %s90
      %p92 = scmp.eq.s32.totalorder %s26, 0
      %p93 = por %p91, %p92
      %s95 = sadd.s32 %s94, 1
      %p98 = scmp.eq.s32.totalorder %s20, 1
      %p99 = scmp.ne.s32.totalorder %s94, %s96
      %p100 = scmp.eq.s32.totalorder %s20, 0
      %p101 = por %p99, %p100
      %p102 = scmp.ne.s32.totalorder %s94, %s96
      %p103 = scmp.eq.s32.totalorder %s25, 1
      %p104 = por %p102, %p103
      %p105 = scmp.ne.s32.totalorder %s96, %s97
      %p106 = scmp.eq.s32.totalorder %s25, 0
      %p107 = por %p105, %p106
      %p108 = scmp.ne.s32.totalorder %s96, %s97
      %p109 = scmp.eq.s32.totalorder %s26, 1
      %p110 = por %p108, %p109
      %p112 = scmp.ne.s32.totalorder %s97, %s111
      %p113 = scmp.eq.s32.totalorder %s26, 0
      %p114 = por %p112, %p113
      %s116 = sadd.s32 %s115, 1
      %p119 = scmp.eq.s32.totalorder %s20, 1
      %p120 = scmp.ne.s32.totalorder %s115, %s117
      %p121 = scmp.eq.s32.totalorder %s20, 0
      %p122 = por %p120, %p121
      %p123 = scmp.ne.s32.totalorder %s115, %s117
      %p124 = scmp.eq.s32.totalorder %s25, 1
      %p125 = por %p123, %p124
      %p126 = scmp.ne.s32.totalorder %s117, %s118
      %p127 = scmp.eq.s32.totalorder %s25, 0
      %p128 = por %p126, %p127
      %p129 = scmp.ne.s32.totalorder %s117, %s118
      %p130 = scmp.eq.s32.totalorder %s26, 1
      %p131 = por %p129, %p130
      %p133 = scmp.ne.s32.totalorder %s118, %s132
      %p134 = scmp.eq.s32.totalorder %s26, 0
      %p135 = por %p133, %p134
      %s137 = sadd.s32 %s136, 1
      %p140 = scmp.eq.s32.totalorder %s20, 1
      %p141 = scmp.ne.s32.totalorder %s136, %s138
      %p142 = scmp.eq.s32.totalorder %s20, 0
      %p143 = por %p141, %p142
      %p144 = scmp.ne.s32.totalorder %s136, %s138
      %p145 = scmp.eq.s32.totalorder %s25, 1
      %p146 = por %p144, %p145
      %p147 = scmp.ne.s32.totalorder %s138, %s139
      %p148 = scmp.eq.s32.totalorder %s25, 0
      %p149 = por %p147, %p148
      %p150 = scmp.ne.s32.totalorder %s138, %s139
      %p151 = scmp.eq.s32.totalorder %s26, 1
      %p152 = por %p150, %p151
      %p154 = scmp.ne.s32.totalorder %s139, %s153
      %p155 = scmp.eq.s32.totalorder %s26, 0
      %p156 = por %p154, %p155
      %s158 = sadd.s32 %s157, 1
      %p161 = scmp.eq.s32.totalorder %s20, 1
      %p162 = scmp.ne.s32.totalorder %s157, %s159
      %p163 = scmp.eq.s32.totalorder %s20, 0
      %p164 = por %p162, %p163
      %p165 = scmp.ne.s32.totalorder %s157, %s159
      %p166 = scmp.eq.s32.totalorder %s25, 1
      %p167 = por %p165, %p166
      %p168 = scmp.ne.s32.totalorder %s159, %s160
      %p169 = scmp.eq.s32.totalorder %s25, 0
      %p170 = por %p168, %p169
      %p171 = scmp.ne.s32.totalorder %s159, %s160
      %p172 = scmp.eq.s32.totalorder %s26, 1
      %p173 = por %p171, %p172
      %p175 = scmp.ne.s32.totalorder %s160, %s174
      %p176 = scmp.eq.s32.totalorder %s26, 0
      %p177 = por %p175, %p176
      %s179 = sadd.s32 %s178, 1
      %p182 = scmp.eq.s32.totalorder %s20, 1
      %p183 = scmp.ne.s32.totalorder %s178, %s180
      %p184 = scmp.eq.s32.totalorder %s20, 0
      %p185 = por %p183, %p184
      %p186 = scmp.ne.s32.totalorder %s178, %s180
      %p187 = scmp.eq.s32.totalorder %s25, 1
      %p188 = por %p186, %p187
      %p189 = scmp.ne.s32.totalorder %s180, %s181
      %p190 = scmp.eq.s32.totalorder %s25, 0
      %p191 = por %p189, %p190
      %p192 = scmp.ne.s32.totalorder %s180, %s181
      %p193 = scmp.eq.s32.totalorder %s26, 1
      %p194 = por %p192, %p193
      %p196 = scmp.ne.s32.totalorder %s181, %s195
      %p197 = scmp.eq.s32.totalorder %s26, 0
      %p198 = por %p196, %p197
      %s199 = ssub.s32 %s27, %s39
      %s200 = ssub.s32 %s28, %s35
      %s201 = sor.u32 %s199, %s200
      %p202 = scmp.eq.s32.totalorder %s201, 0
      %s204 = sadd.s32 %s203, 1
      %s205 = scalar_select %p202, %s203, %s204
      %p208 = pneg %p202
      %p209 = scmp.eq.s32.totalorder %s20, 1
      %p210 = por %p208, %p209
      %p211 = scmp.ne.s32.totalorder %s203, %s206
      %p212 = scmp.eq.s32.totalorder %s20, 0
      %p213 = por %p211, %p212
      %p214 = scmp.ne.s32.totalorder %s203, %s206
      %p215 = scmp.eq.s32.totalorder %s25, 1
      %p216 = por %p214, %p215
      %p217 = scmp.ne.s32.totalorder %s206, %s207
      %p218 = scmp.eq.s32.totalorder %s25, 0
      %p219 = por %p217, %p218
      %p220 = scmp.ne.s32.totalorder %s206, %s207
      %p221 = scmp.eq.s32.totalorder %s26, 1
      %p222 = por %p220, %p221
      %p224 = scmp.ne.s32.totalorder %s207, %s223
      %p225 = scmp.eq.s32.totalorder %s26, 0
      %p226 = por %p224, %p225
      %p227 = scmp.le.s32.totalorder 1, %s20
      %p228 = scmp.lt.s32.totalorder %s20, 3
      %p229 = pnand %p227, %p228
      %p230 = pneg %p229
      // Predicated region
      $region9: #{tpu_custom_call.1} parent=5 // pred_check
        _
      $region10: #{tpu_custom_call.1} parent=5 // pred_check_branch
        %232 = sbr.rel (%p229) target = $region12
      $region11: #{tpu_custom_call.1} parent=5 // pred_region
        %s233 = ssub.s32 %s20, 1
        // Predicated region
        $region13: #{tpu_custom_call.1} parent=11 // pred_check
          %p234 = pneg %p107
        $region14: #{tpu_custom_call.1} parent=11 // pred_check_branch
          %236 = sbr.rel (%p234) target = $region16
        $region15: #{tpu_custom_call.1} parent=11 // pred_region
          _
        $region16: #{tpu_custom_call.1} parent=11 // pred_fallthru
          _
        // Predicated region
        $region17: #{tpu_custom_call.1} parent=11 // pred_check
          %p237 = pneg %p128
        $region18: #{tpu_custom_call.1} parent=11 // pred_check_branch
          %239 = sbr.rel (%p237) target = $region20
        $region19: #{tpu_custom_call.1} parent=11 // pred_region
          _
        $region20: #{tpu_custom_call.1} parent=11 // pred_fallthru
          _
        // Predicated region
        $region21: #{tpu_custom_call.1} parent=11 // pred_check
          %p240 = pneg %p149
        $region22: #{tpu_custom_call.1} parent=11 // pred_check_branch
          %242 = sbr.rel (%p240) target = $region24
        $region23: #{tpu_custom_call.1} parent=11 // pred_region
          %s244 = ssub.s32 1024, 1024
          %245 = vsyncadd [#allocation6], %s244
          %s246 = sshll.u32 [#allocation5], 4
          %s247 = int_to_ptr.vmem [resolvable:$true] %s246
          %252 = dma.hbm_to_vmem [thread:$0]  %s4, 1024, %s247, [#allocation6], 64, 64, 4
        $region24: #{tpu_custom_call.1} parent=11 // pred_fallthru
          _
        // Predicated region
        $region25: #{tpu_custom_call.1} parent=11 // pred_check
          %p253 = pneg %p170
        $region26: #{tpu_custom_call.1} parent=11 // pred_check_branch
          %255 = sbr.rel (%p253) target = $region28
        $region27: #{tpu_custom_call.1} parent=11 // pred_region
          _
        $region28: #{tpu_custom_call.1} parent=11 // pred_fallthru
          _
        // Predicated region
        $region29: #{tpu_custom_call.1} parent=11 // pred_check
          %p256 = pneg %p191
        $region30: #{tpu_custom_call.1} parent=11 // pred_check_branch
          %258 = sbr.rel (%p256) target = $region32
        $region31: #{tpu_custom_call.1} parent=11 // pred_region
          _
        $region32: #{tpu_custom_call.1} parent=11 // pred_fallthru
          _
      $region12: #{tpu_custom_call.1} parent=5 // pred_fallthru
        _
      %p259 = scmp.lt.s32.totalorder %s20, 2
      // Predicated region
      $region33: #{tpu_custom_call.1} parent=5 // pred_check
        %p260 = pneg %p259
      $region34: #{tpu_custom_call.1} parent=5 // pred_check_branch
        %262 = sbr.rel (%p260) target = $region36
      $region35: #{tpu_custom_call.1} parent=5 // pred_region
        // Predicated region
        $region37: #{tpu_custom_call.1} parent=35 // pred_check
          %p263 = pneg %p54
        $region38: #{tpu_custom_call.1} parent=35 // pred_check_branch
          %265 = sbr.rel (%p263) target = $region40
        $region39: #{tpu_custom_call.1} parent=35 // pred_region
          %p266 = scmp.lt.s32.totalorder %s27, 1
          %s267 = scalar_select %p266, %s27, 1
          %p268 = scmp.lt.s32.totalorder %s28, 0
          %s269 = scalar_select %p268, %s28, 0
          %s270 = sadd.s32 %s269, %s267
          %s271 = scalar_lea.vmem %s0, %s270
        $region40: #{tpu_custom_call.1} parent=35 // pred_fallthru
          _
        // Predicated region
        $region41: #{tpu_custom_call.1} parent=35 // pred_check
          %p272 = pneg %p80
        $region42: #{tpu_custom_call.1} parent=35 // pred_check_branch
          %274 = sbr.rel (%p272) target = $region44
        $region43: #{tpu_custom_call.1} parent=35 // pred_region
          %s275 = sand.u32 %s70, 1
          %s276 = scalar_lea.sflag [#allocation3], %s275
          %s277 = sand.u32 %s70, 1
          %s278 = scalar_lea.vmem [#allocation2], %s277
          %s280 = ssub.s32 16, 16
          %281 = vsyncadd %s276, %s280
          %s282 = smul.addr %s27, 16
          %s283 = scalar_lea.hbm %s1, %s282
          %s285 = sshll.u32 %s278, 4
          %s286 = int_to_ptr.vmem [resolvable:$true] %s285
          %288 = dma.hbm_to_vmem [thread:$0]  %s283, 16, %s286, %s276
        $region44: #{tpu_custom_call.1} parent=35 // pred_fallthru
          _
      $region36: #{tpu_custom_call.1} parent=5 // pred_fallthru
        _
      %p289 = scmp.le.s32.totalorder 1, %s20
      %p290 = scmp.lt.s32.totalorder %s20, 3
      %p291 = pnand %p289, %p290
      %p292 = pneg %p291
      // Predicated region
      $region45: #{tpu_custom_call.1} parent=5 // pred_check
        _
      $region46: #{tpu_custom_call.1} parent=5 // pred_check_branch
        %294 = sbr.rel (%p291) target = $region48
      $region47: #{tpu_custom_call.1} parent=5 // pred_region
        %s295 = ssub.s32 %s20, 1
        %s296 = sand.u32 %s73, 1
        %s297 = scalar_lea.sflag [#allocation3], %s296
        %s298 = sand.u32 %s73, 1
        %s299 = scalar_lea.vmem [#allocation2], %s298
        // Predicated region
        $region49: #{tpu_custom_call.1} parent=47 // pred_check
          %p300 = pneg %p86
        $region50: #{tpu_custom_call.1} parent=47 // pred_check_branch
          %302 = sbr.rel (%p300) target = $region52
        $region51: #{tpu_custom_call.1} parent=47 // pred_region
          %303 = dma.done %s297, 16
        $region52: #{tpu_custom_call.1} parent=47 // pred_fallthru
          _
        // Predicated region
        $region53: #{tpu_custom_call.1} parent=47 // pred_check
          %p304 = pneg %p149
        $region54: #{tpu_custom_call.1} parent=47 // pred_check_branch
          %306 = sbr.rel (%p304) target = $region56
        $region55: #{tpu_custom_call.1} parent=47 // pred_region
          %307 = dma.done [#allocation6], 1024
        $region56: #{tpu_custom_call.1} parent=47 // pred_fallthru
          _
        %p308 = scmp.lt.s32.totalorder %s29, 1
        %s309 = scalar_select %p308, %s29, 1
        %p310 = scmp.lt.s32.totalorder %s30, 0
        %s311 = scalar_select %p310, %s30, 0
        %s312 = sadd.s32 %s311, %s309
        %s313 = scalar_lea.vmem %s0, %s312
        %p314 = pneg %p60
        %p315 = pneg %p57
        %s316 = sand.u32 %s73, 1
        %s317 = scalar_lea.sflag [#allocation3], %s316
        %s318 = sand.u32 %s73, 1
        %s319 = scalar_lea.vmem [#allocation2], %s318
        %p320 = pneg %p86
        %p321 = pneg %p83
        %p322 = pneg %p107
        %p323 = pneg %p104
        %p324 = pneg %p128
        %p325 = pneg %p125
        %p326 = pneg %p149
        %p327 = pneg %p146
        %p328 = pneg %p170
        %p329 = pneg %p167
        %p330 = pneg %p191
        %p331 = pneg %p188
        %p332 = pneg %p219
        %p333 = pneg %p216
        %s334 = sand.u32 %s206, 1
        %s335 = scalar_lea.sflag [#allocation4], %s334
        %s336 = sand.u32 %s206, 1
        %s337 = smul.addr %s336, 2
        %s338 = scalar_lea.vmem [#allocation7], %s337
        %p339 = scmp.lt.s32.totalorder %s29, 1
        %s340 = scalar_select %p339, %s29, 1
        %p341 = scmp.lt.s32.totalorder %s30, 0
        %s342 = scalar_select %p341, %s30, 0
        %s343 = sadd.s32 %s342, %s340
        %s344 = scalar_lea.vmem %s0, %s343
        %v346 = vld [vmem:[%s344] sm:$0x1]
        %v347 = vld [vmem:[%s299] sm:$0x1]
        %v348 = vld [vmem:[%s2] sm:$0xf]
        %v349 = vld [vmem:[%s2 + $0x4] sm:$0xf]
        %v350 = vld [vmem:[%s2 + $0x8] sm:$0xf]
        %v351 = vld [vmem:[%s2 + $0xc] sm:$0xf]
        %v353 = vlaneseq
        %v354 = vshrl.u32 %v353, 7
        %v355 = vsub.s32 0, %v354
        %v356 = vrot.slane %v347, %v355
        %v362 = vunpack.c.l.b16 %v348
        %v363 = vunpack.c.l.b16 %v349
        %v364 = vunpack.c.l.b16 %v350
        %v365 = vunpack.c.l.b16 %v351
        %v366 = vpack.c.b16 %v363, %v362
        %v367 = vpack.c.b16 %v365, %v364
        %vm370 = vcmask 261120
        %v372 = vsel %vm370, %v346, 0
        %374 = vmatprep.subr.bf16.mxu0 0
        %375 = vmatpush1.bf16.msra.mxu0 %v366
        %376 = vmatprep.subr.bf16.mxu0 0
        %377 = vmatpush1.bf16.msra.mxu0 %v367
        %378 = vmatprep.subr.bf16.mxu0 0
        %379 = vmatpush1.bf16.msra.mxu0 0
        %380 = vmatprep.subr.bf16.mxu0 0
        %381 = vmatpush1.bf16.msra.mxu0 0
        %382 = vmatprep.subr.bf16.mxu0 0
        %383 = vmatpush1.bf16.msra.mxu0 0
        %384 = vmatprep.subr.bf16.mxu0 0
        %385 = vmatpush1.bf16.msra.mxu0 0
        %386 = vmatprep.subr.bf16.mxu0 0
        %387 = vmatpush1.bf16.msra.mxu0 0
        %388 = vmatprep.subr.bf16.mxu0 0
        %389 = vmatpush1.bf16.msra.mxu0 0
        %390 = vmatprep.subr.bf16.mxu0 0
        %391 = vmatpush1.bf16.msra.mxu0 0
        %392 = vmatprep.subr.bf16.mxu0 0
        %393 = vmatpush1.bf16.msra.mxu0 0
        %394 = vmatprep.subr.bf16.mxu0 0
        %395 = vmatpush1.bf16.msra.mxu0 0
        %396 = vmatprep.subr.bf16.mxu0 0
        %397 = vmatpush1.bf16.msra.mxu0 0
        %398 = vmatprep.subr.bf16.mxu0 0
        %399 = vmatpush1.bf16.msra.mxu0 0
        %400 = vmatprep.subr.bf16.mxu0 0
        %401 = vmatpush1.bf16.msra.mxu0 0
        %402 = vmatprep.subr.bf16.mxu0 0
        %403 = vmatpush1.bf16.msra.mxu0 0
        %404 = vmatprep.subr.bf16.mxu0 0
        %405 = vmatpush1.bf16.msra.mxu0 0
        %406 = vmatprep.mubr.bf16.mxu0 0
        %407 = vmatmul.mubr.bf16.gmra.mrb[0].mxu0 %v372
        %v408 = vpop.f32.mrb[0].mxu0
        %v409 = vadd.f32 %v356, %v408
        %v410 = vpop.f32.mrb[0].mxu0
        %v411 = vpop.f32.mrb[0].mxu0
        %v412 = vpop.f32.mrb[0].mxu0
        %413 = vdwg.mxu0
        %v414 = vpack.c.bf16 %v409, %v409
        %v415 = vld [vmem:[%s3] sm:$0xf]
        %v416 = vld [vmem:[%s3 + $0x4] sm:$0xf]
        %v417 = vld [vmem:[%s3 + $0x8] sm:$0xf]
        %v418 = vld [vmem:[%s3 + $0xc] sm:$0xf]
        %v419 = vld [vmem:[%s3 + $0x10] sm:$0xf]
        %v420 = vld [vmem:[%s3 + $0x14] sm:$0xf]
        %v421 = vld [vmem:[%s3 + $0x18] sm:$0xf]
        %v422 = vld [vmem:[%s3 + $0x1c] sm:$0xf]
        %v423 = vld [vmem:[%s3 + $0x20] sm:$0xf]
        %v424 = vld [vmem:[%s3 + $0x24] sm:$0xf]
        %v425 = vld [vmem:[%s3 + $0x28] sm:$0xf]
        %v426 = vld [vmem:[%s3 + $0x2c] sm:$0xf]
        %v427 = vld [vmem:[%s3 + $0x30] sm:$0xf]
        %v428 = vld [vmem:[%s3 + $0x34] sm:$0xf]
        %v429 = vld [vmem:[%s3 + $0x38] sm:$0xf]
        %v430 = vld [vmem:[%s3 + $0x3c] sm:$0xf]
        %v431 = vld [vmem:[%s6] sm:$0x1]
        %v432 = vlaneseq
        %v433 = vshrl.u32 %v432, 7
        %v434 = vsub.s32 0, %v433
        %v435 = vrot.slane %v431, %v434
        %v452 = vunpack.c.l.b16 %v415
        %v453 = vunpack.c.l.b16 %v416
        %v454 = vunpack.c.l.b16 %v417
        %v455 = vunpack.c.l.b16 %v418
        %v456 = vunpack.c.l.b16 %v419
        %v457 = vunpack.c.l.b16 %v420
        %v458 = vunpack.c.l.b16 %v421
        %v459 = vunpack.c.l.b16 %v422
        %v460 = vunpack.c.l.b16 %v423
        %v461 = vunpack.c.l.b16 %v424
        %v462 = vunpack.c.l.b16 %v425
        %v463 = vunpack.c.l.b16 %v426
        %v464 = vunpack.c.l.b16 %v427
        %v465 = vunpack.c.l.b16 %v428
        %v466 = vunpack.c.l.b16 %v429
        %v467 = vunpack.c.l.b16 %v430
        %v468 = vpack.c.b16 %v453, %v452
        %v469 = vpack.c.b16 %v455, %v454
        %v470 = vpack.c.b16 %v457, %v456
        %v471 = vpack.c.b16 %v459, %v458
        %v472 = vpack.c.b16 %v461, %v460
        %v473 = vpack.c.b16 %v463, %v462
        %v474 = vpack.c.b16 %v465, %v464
        %v475 = vpack.c.b16 %v467, %v466
        %484 = vmatprep.subr.bf16.mxu0 0
        %485 = vmatpush1.bf16.msra.mxu0 %v468
        %486 = vmatprep.subr.bf16.mxu0 0
        %487 = vmatpush1.bf16.msra.mxu0 %v469
        %488 = vmatprep.subr.bf16.mxu0 0
        %489 = vmatpush1.bf16.msra.mxu0 %v470
        %490 = vmatprep.subr.bf16.mxu0 0
        %491 = vmatpush1.bf16.msra.mxu0 %v471
        %492 = vmatprep.subr.bf16.mxu0 0
        %493 = vmatpush1.bf16.msra.mxu0 %v472
        %494 = vmatprep.subr.bf16.mxu0 0
        %495 = vmatpush1.bf16.msra.mxu0 %v473
        %496 = vmatprep.subr.bf16.mxu0 0
        %497 = vmatpush1.bf16.msra.mxu0 %v474
        %498 = vmatprep.subr.bf16.mxu0 0
        %499 = vmatpush1.bf16.msra.mxu0 %v475
        %500 = vmatprep.subr.bf16.mxu0 0
        %501 = vmatpush1.bf16.msra.mxu0 0
        %502 = vmatprep.subr.bf16.mxu0 0
        %503 = vmatpush1.bf16.msra.mxu0 0
        %504 = vmatprep.subr.bf16.mxu0 0
        %505 = vmatpush1.bf16.msra.mxu0 0
        %506 = vmatprep.subr.bf16.mxu0 0
        %507 = vmatpush1.bf16.msra.mxu0 0
        %508 = vmatprep.subr.bf16.mxu0 0
        %509 = vmatpush1.bf16.msra.mxu0 0
        %510 = vmatprep.subr.bf16.mxu0 0
        %511 = vmatpush1.bf16.msra.mxu0 0
        %512 = vmatprep.subr.bf16.mxu0 0
        %513 = vmatpush1.bf16.msra.mxu0 0
        %514 = vmatprep.subr.bf16.mxu0 0
        %515 = vmatpush1.bf16.msra.mxu0 0
        %516 = vmatprep.mubr.bf16.mxu0 0
        %517 = vmatmul.mubr.bf16.gmra.mrb[0].mxu0 %v414
        %v518 = vpop.f32.mrb[0].mxu0
        %v519 = vadd.f32 %v435, %v518
        %v520 = vpop.f32.mrb[0].mxu0
        %v521 = vpop.f32.mrb[0].mxu0
        %v522 = vpop.f32.mrb[0].mxu0
        %523 = vdwg.mxu0
        %v524 = vmax.f32 %v519, 0.0
        %v525 = vpack.c.bf16 %v524, %v524
        %v526 = vld [vmem:[#allocation5] sm:$0xf]
        %v527 = vld [vmem:[#allocation5 + $0x4] sm:$0xf]
        %v528 = vld [vmem:[#allocation5 + $0x8] sm:$0xf]
        %v529 = vld [vmem:[#allocation5 + $0xc] sm:$0xf]
        %v530 = vld [vmem:[#allocation5 + $0x10] sm:$0xf]
        %v531 = vld [vmem:[#allocation5 + $0x14] sm:$0xf]
        %v532 = vld [vmem:[#allocation5 + $0x18] sm:$0xf]
        %v533 = vld [vmem:[#allocation5 + $0x1c] sm:$0xf]
        %v534 = vld [vmem:[#allocation5 + $0x20] sm:$0xf]
        %v535 = vld [vmem:[#allocation5 + $0x24] sm:$0xf]
        %v536 = vld [vmem:[#allocation5 + $0x28] sm:$0xf]
        %v537 = vld [vmem:[#allocation5 + $0x2c] sm:$0xf]
        %v538 = vld [vmem:[#allocation5 + $0x30] sm:$0xf]
        %v539 = vld [vmem:[#allocation5 + $0x34] sm:$0xf]
        %v540 = vld [vmem:[#allocation5 + $0x38] sm:$0xf]
        %v541 = vld [vmem:[#allocation5 + $0x3c] sm:$0xf]
        %v542 = vld [vmem:[%s6 + $0x1] sm:$0x1]
        %v543 = vlaneseq
        %v544 = vshrl.u32 %v543, 7
        %v545 = vsub.s32 0, %v544
        %v546 = vrot.slane %v542, %v545
        %v563 = vunpack.c.l.b16 %v526
        %v564 = vunpack.c.l.b16 %v527
        %v565 = vunpack.c.l.b16 %v528
        %v566 = vunpack.c.l.b16 %v529
        %v567 = vunpack.c.l.b16 %v530
        %v568 = vunpack.c.l.b16 %v531
        %v569 = vunpack.c.l.b16 %v532
        %v570 = vunpack.c.l.b16 %v533
        %v571 = vunpack.c.l.b16 %v534
        %v572 = vunpack.c.l.b16 %v535
        %v573 = vunpack.c.l.b16 %v536
        %v574 = vunpack.c.l.b16 %v537
        %v575 = vunpack.c.l.b16 %v538
        %v576 = vunpack.c.l.b16 %v539
        %v577 = vunpack.c.l.b16 %v540
        %v578 = vunpack.c.l.b16 %v541
        %v579 = vpack.c.b16 %v564, %v563
        %v580 = vpack.c.b16 %v566, %v565
        %v581 = vpack.c.b16 %v568, %v567
        %v582 = vpack.c.b16 %v570, %v569
        %v583 = vpack.c.b16 %v572, %v571
        %v584 = vpack.c.b16 %v574, %v573
        %v585 = vpack.c.b16 %v576, %v575
        %v586 = vpack.c.b16 %v578, %v577
        %595 = vmatprep.subr.bf16.mxu0 0
        %596 = vmatpush1.bf16.msra.mxu0 %v579
        %597 = vmatprep.subr.bf16.mxu0 0
        %598 = vmatpush1.bf16.msra.mxu0 %v580
        %599 = vmatprep.subr.bf16.mxu0 0
        %600 = vmatpush1.bf16.msra.mxu0 %v581
        %601 = vmatprep.subr.bf16.mxu0 0
        %602 = vmatpush1.bf16.msra.mxu0 %v582
        %603 = vmatprep.subr.bf16.mxu0 0
        %604 = vmatpush1.bf16.msra.mxu0 %v583
        %605 = vmatprep.subr.bf16.mxu0 0
        %606 = vmatpush1.bf16.msra.mxu0 %v584
        %607 = vmatprep.subr.bf16.mxu0 0
        %608 = vmatpush1.bf16.msra.mxu0 %v585
        %609 = vmatprep.subr.bf16.mxu0 0
        %610 = vmatpush1.bf16.msra.mxu0 %v586
        %611 = vmatprep.subr.bf16.mxu0 0
        %612 = vmatpush1.bf16.msra.mxu0 0
        %613 = vmatprep.subr.bf16.mxu0 0
        %614 = vmatpush1.bf16.msra.mxu0 0
        %615 = vmatprep.subr.bf16.mxu0 0
        %616 = vmatpush1.bf16.msra.mxu0 0
        %617 = vmatprep.subr.bf16.mxu0 0
        %618 = vmatpush1.bf16.msra.mxu0 0
        %619 = vmatprep.subr.bf16.mxu0 0
        %620 = vmatpush1.bf16.msra.mxu0 0
        %621 = vmatprep.subr.bf16.mxu0 0
        %622 = vmatpush1.bf16.msra.mxu0 0
        %623 = vmatprep.subr.bf16.mxu0 0
        %624 = vmatpush1.bf16.msra.mxu0 0
        %625 = vmatprep.subr.bf16.mxu0 0
        %626 = vmatpush1.bf16.msra.mxu0 0
        %627 = vmatprep.mubr.bf16.mxu0 0
        %628 = vmatmul.mubr.bf16.gmra.mrb[0].mxu0 %v525
        %v629 = vpop.f32.mrb[0].mxu0
        %v630 = vadd.f32 %v546, %v629
        %v631 = vpop.f32.mrb[0].mxu0
        %v632 = vpop.f32.mrb[0].mxu0
        %v633 = vpop.f32.mrb[0].mxu0
        %634 = vdwg.mxu0
        %v635 = vmax.f32 %v630, 0.0
        %v636 = vpack.c.bf16 %v635, %v635
        %v637 = vld [vmem:[%s5] sm:$0xf]
        %v638 = vld [vmem:[%s5 + $0x4] sm:$0xf]
        %v639 = vld [vmem:[%s5 + $0x8] sm:$0xf]
        %v640 = vld [vmem:[%s5 + $0xc] sm:$0xf]
        %v641 = vld [vmem:[%s5 + $0x10] sm:$0xf]
        %v642 = vld [vmem:[%s5 + $0x14] sm:$0xf]
        %v643 = vld [vmem:[%s5 + $0x18] sm:$0xf]
        %v644 = vld [vmem:[%s5 + $0x1c] sm:$0xf]
        %v645 = vld [vmem:[%s5 + $0x20] sm:$0xf]
        %v646 = vld [vmem:[%s5 + $0x24] sm:$0xf]
        %v647 = vld [vmem:[%s5 + $0x28] sm:$0xf]
        %v648 = vld [vmem:[%s5 + $0x2c] sm:$0xf]
        %v649 = vld [vmem:[%s5 + $0x30] sm:$0xf]
        %v650 = vld [vmem:[%s5 + $0x34] sm:$0xf]
        %v651 = vld [vmem:[%s5 + $0x38] sm:$0xf]
        %v652 = vld [vmem:[%s5 + $0x3c] sm:$0xf]
        %v653 = vld [vmem:[%s6 + $0x2] sm:$0x1]
        %v654 = vlaneseq
        %v655 = vshrl.u32 %v654, 7
        %v656 = vsub.s32 0, %v655
        %v657 = vrot.slane %v653, %v656
        %v674 = vunpack.c.l.b16 %v637
        %v675 = vunpack.c.l.b16 %v638
        %v676 = vunpack.c.l.b16 %v639
        %v677 = vunpack.c.l.b16 %v640
        %v678 = vunpack.c.l.b16 %v641
        %v679 = vunpack.c.l.b16 %v642
        %v680 = vunpack.c.l.b16 %v643
        %v681 = vunpack.c.l.b16 %v644
        %v682 = vunpack.c.l.b16 %v645
        %v683 = vunpack.c.l.b16 %v646
        %v684 = vunpack.c.l.b16 %v647
        %v685 = vunpack.c.l.b16 %v648
        %v686 = vunpack.c.l.b16 %v649
        %v687 = vunpack.c.l.b16 %v650
        %v688 = vunpack.c.l.b16 %v651
        %v689 = vunpack.c.l.b16 %v652
        %v690 = vpack.c.b16 %v675, %v674
        %v691 = vpack.c.b16 %v677, %v676
        %v692 = vpack.c.b16 %v679, %v678
        %v693 = vpack.c.b16 %v681, %v680
        %v694 = vpack.c.b16 %v683, %v682
        %v695 = vpack.c.b16 %v685, %v684
        %v696 = vpack.c.b16 %v687, %v686
        %v697 = vpack.c.b16 %v689, %v688
        %706 = vmatprep.subr.bf16.mxu0 0
        %707 = vmatpush1.bf16.msra.mxu0 %v690
        %708 = vmatprep.subr.bf16.mxu0 0
        %709 = vmatpush1.bf16.msra.mxu0 %v691
        %710 = vmatprep.subr.bf16.mxu0 0
        %711 = vmatpush1.bf16.msra.mxu0 %v692
        %712 = vmatprep.subr.bf16.mxu0 0
        %713 = vmatpush1.bf16.msra.mxu0 %v693
        %714 = vmatprep.subr.bf16.mxu0 0
        %715 = vmatpush1.bf16.msra.mxu0 %v694
        %716 = vmatprep.subr.bf16.mxu0 0
        %717 = vmatpush1.bf16.msra.mxu0 %v695
        %718 = vmatprep.subr.bf16.mxu0 0
        %719 = vmatpush1.bf16.msra.mxu0 %v696
        %720 = vmatprep.subr.bf16.mxu0 0
        %721 = vmatpush1.bf16.msra.mxu0 %v697
        %722 = vmatprep.subr.bf16.mxu0 0
        %723 = vmatpush1.bf16.msra.mxu0 0
        %724 = vmatprep.subr.bf16.mxu0 0
        %725 = vmatpush1.bf16.msra.mxu0 0
        %726 = vmatprep.subr.bf16.mxu0 0
        %727 = vmatpush1.bf16.msra.mxu0 0
        %728 = vmatprep.subr.bf16.mxu0 0
        %729 = vmatpush1.bf16.msra.mxu0 0
        %730 = vmatprep.subr.bf16.mxu0 0
        %731 = vmatpush1.bf16.msra.mxu0 0
        %732 = vmatprep.subr.bf16.mxu0 0
        %733 = vmatpush1.bf16.msra.mxu0 0
        %734 = vmatprep.subr.bf16.mxu0 0
        %735 = vmatpush1.bf16.msra.mxu0 0
        %736 = vmatprep.subr.bf16.mxu0 0
        %737 = vmatpush1.bf16.msra.mxu0 0
        %738 = vmatprep.mubr.bf16.mxu0 0
        %739 = vmatmul.mubr.bf16.gmra.mrb[0].mxu0 %v636
        %v740 = vpop.f32.mrb[0].mxu0
        %v741 = vadd.f32 %v657, %v740
        %v742 = vpop.f32.mrb[0].mxu0
        %v743 = vpop.f32.mrb[0].mxu0
        %v744 = vpop.f32.mrb[0].mxu0
        %745 = vdwg.mxu0
        %vm746 = vcmask 123904
        %747 = vst.msk [vmem:[%s338] sm:$0x3] %vm746, %v741
        %s748 = sand.u32 %s206, 1
        %s749 = scalar_lea.sflag [#allocation4], %s748
        %s750 = sand.u32 %s206, 1
        %s751 = smul.addr %s750, 2
        %s752 = scalar_lea.vmem [#allocation7], %s751
        // Predicated region
        $region57: #{tpu_custom_call.1} parent=47 // pred_check
          %p753 = pneg %p216
        $region58: #{tpu_custom_call.1} parent=47 // pred_check_branch
          %755 = sbr.rel (%p753) target = $region60
        $region59: #{tpu_custom_call.1} parent=47 // pred_region
          %s757 = ssub.s32 32, 32
          %758 = vsyncadd %s749, %s757
          %s759 = sadd.s32 %s30, %s29
          %s760 = smul.addr %s759, 32
          %s761 = scalar_lea.hbm %s7, %s760
          %s763 = sshll.u32 %s752, 4
          %s764 = int_to_ptr.vmem [resolvable:$true] %s763
          %766 = dma.vmem_to_hbm [thread:$0]  %s764, 32, %s761, %s749
        $region60: #{tpu_custom_call.1} parent=47 // pred_fallthru
          _
      $region48: #{tpu_custom_call.1} parent=5 // pred_fallthru
        _
      %p767 = scmp.le.s32.totalorder 2, %s20
      // Predicated region
      $region61: #{tpu_custom_call.1} parent=5 // pred_check
        %p768 = pneg %p767
      $region62: #{tpu_custom_call.1} parent=5 // pred_check_branch
        %770 = sbr.rel (%p768) target = $region64
      $region63: #{tpu_custom_call.1} parent=5 // pred_region
        %s771 = ssub.s32 %s20, 2
        // Predicated region
        $region65: #{tpu_custom_call.1} parent=63 // pred_check
          %p772 = pneg %p222
        $region66: #{tpu_custom_call.1} parent=63 // pred_check_branch
          %774 = sbr.rel (%p772) target = $region68
        $region67: #{tpu_custom_call.1} parent=63 // pred_region
          %s775 = sand.u32 %s207, 1
          %s776 = scalar_lea.sflag [#allocation4], %s775
          %s777 = sand.u32 %s207, 1
          %s778 = smul.addr %s777, 2
          %s779 = scalar_lea.vmem [#allocation7], %s778
          %780 = dma.done %s776, 32
        $region68: #{tpu_custom_call.1} parent=63 // pred_fallthru
          _
      $region64: #{tpu_custom_call.1} parent=5 // pred_fallthru
        _
    $region6: #{tpu_custom_call.1} parent=1 // loop_footer
      %s24 = sadd.s32 1, %s20
    $region7: #{tpu_custom_call.1} parent=1 // loop_footer_branch
      %19 = sbr.rel target = $region3
    $region8: #{tpu_custom_call.1} parent=1 // loop_exit
      _
    %781 = vsyncpa [#allocation3], 1
    %s782 = scalar_lea.sflag [#allocation3], 1
    %783 = vsyncpa %s782, 1
    %784 = vsyncpa [#allocation6], 1
    %785 = vsyncpa [#allocation4], 1
    %s786 = scalar_lea.sflag [#allocation4], 1
    %787 = vsyncpa %s786, 1

</llo_original>
